<compile_context>
chip_gen: v5e
topology: v5e:2x2
jax: 0.10.0
libtpu: 0.0.40
codegen_flags: <defaults>
</compile_context>

<pallas_src>
import jax
import jax.numpy as jnp
import numpy as np
from jax.experimental import pallas as pl
from jax.experimental.pallas import tpu as pltpu

VOCAB_PAD = 128       # lane-dense padded vocab width
NEG_INF = -1e30       # bias padding -> exp underflows to 0, max/LSE unchanged (f32 only)


def _round_up(x, m):
    return ((x + m - 1) // m) * m


def _cdiv(a, b):
    return (a + b - 1) // b


def policy_head_kernel(scal_ref, x_ref, wlin_ref, blin_ref, out_ref):
    # scal_ref: (C+1,)        f32 SMEM  -- [a*conv_w[0..C-1], folded bias b]
    # x_ref:    (TB, C*HW)    f32 VMEM  -- pipelined batch tile, channels on lanes
    # wlin_ref: (HW, VP)      f32 VMEM  -- resident (vocab padded with zero cols)
    # blin_ref: (1, VP)       f32 VMEM  -- resident (padded cols = NEG_INF)
    # out_ref:  (TB, VP)      f32 VMEM
    hw = wlin_ref.shape[0]
    num_channels = x_ref.shape[1] // hw

    # conv1x1 with the BN scale folded into the weights and the folded bias seeding the
    # accumulator: statically unrolled VPU multiply-add over lane-aligned channel slices.
    acc = scal_ref[num_channels] + scal_ref[0] * x_ref[:, 0:hw]
    for c in range(1, num_channels):
        acc = acc + scal_ref[c] * x_ref[:, c * hw:(c + 1) * hw]

    # ReLU
    h = jnp.maximum(acc, 0.0)                                     # (TB, HW)

    # Linear on the MXU: (TB, HW) @ (HW, VP) + (1, VP)
    z = jnp.dot(h, wlin_ref[...], preferred_element_type=jnp.float32) + blin_ref[...]

    # log_softmax over the (lane-dense, padded) vocab axis, reusing the shifted logits.
    m = jnp.max(z, axis=-1, keepdims=True)
    zm = z - m
    lse = jnp.log(jnp.sum(jnp.exp(zm), axis=-1, keepdims=True))
    out_ref[...] = zm - lse


def policy_head_forward(x_nchw, params, eps=1e-5):
    B, C, H, W = x_nchw.shape
    HW = H * W
    V = params["lin_b"].shape[0]
    VP = max(VOCAB_PAD, _round_up(V, 128))

    # ---- Batch tile selection (padding-aware, C/VMEM-budget-aware) -----------------------
    # Double-buffered per-row bytes for the x tile and the output tile.
    bytes_per_row = 2 * (C * HW + VP) * 4
    TB_BUDGET_BYTES = 12 * 1024 * 1024            # safe under v5e's 16 MiB scoped default
    tb_cap = max(8, min(512, (TB_BUDGET_BYTES // bytes_per_row) // 8 * 8))

    num_tiles = _cdiv(B, tb_cap)
    if B >= 16:
        num_tiles = max(2, num_tiles)             # >=2 grid steps so v7x's 2 TCs both work
    TB = _round_up(_cdiv(B, num_tiles), 8)        # <= tb_cap (tb_cap is a multiple of 8)
    B_pad = num_tiles * TB

    # ---- Inputs ---------------------------------------------------------------------------
    # (B, C*HW): zero-copy contiguous reshape of NCHW; channels live on lanes in 256-wide
    # (multiple-of-128) slices.  Only batch padding is added.
    x = x_nchw.reshape(B, C * HW).astype(jnp.float32)
    if B_pad != B:
        x = jnp.pad(x, ((0, B_pad - B), (0, 0)))

    # Fold conv bias + eval-mode BatchNorm2d(1):
    #   BN(conv(x)) = a * (sum_c w_c x_c + conv_b - mean) + beta
    #               = sum_c (a*w_c) x_c + (a*(conv_b - mean) + beta)
    inv_std = 1.0 / jnp.sqrt(params["bn_var"].astype(jnp.float32) + eps)
    a = params["bn_gamma"].astype(jnp.float32) * inv_std
    b = a * (params["conv_b"].astype(jnp.float32)
             - params["bn_mean"].astype(jnp.float32)) + params["bn_beta"].astype(jnp.float32)
    w_scaled = a * params["conv_w"].reshape(C).astype(jnp.float32)
    scal = jnp.concatenate([w_scaled, b.reshape(1)]).astype(jnp.float32)   # (C+1,) 1-D SMEM

    # Linear weight transposed + vocab padded to 128 lanes (zero cols, -inf-like bias).
    w_lin = jnp.pad(params["lin_w"].T.astype(jnp.float32), ((0, 0), (0, VP - V)))
    b_lin = jnp.pad(params["lin_b"].astype(jnp.float32), (0, VP - V),
                    constant_values=NEG_INF).reshape(1, VP)

    # Explicit VMEM limit with headroom (double-buffered x/out tiles + resident weights).
    vmem_needed = (2 * TB * C * HW + 2 * TB * VP + 2 * HW * VP + 2 * 8 * VP) * 4
    vmem_limit = int(min(vmem_needed + (4 << 20), 48 << 20))

    grid = (num_tiles,)
    out = pl.pallas_call(
        policy_head_kernel,
        out_shape=jax.ShapeDtypeStruct((B_pad, VP), jnp.float32),
        grid=grid,
        in_specs=[
            pl.BlockSpec(memory_space=pltpu.MemorySpace.SMEM),        # folded scalars
            pl.BlockSpec((TB, C * HW), lambda i: (i, 0)),             # pipelined x tiles
            pl.BlockSpec((HW, VP), lambda i: (0, 0)),                 # resident linear weight
            pl.BlockSpec((1, VP), lambda i: (0, 0)),                  # resident linear bias
        ],
        out_specs=pl.BlockSpec((TB, VP), lambda i: (i, 0)),
        compiler_params=pltpu.CompilerParams(
            dimension_semantics=("parallel",),                        # shard batch across TCs
            vmem_limit_bytes=vmem_limit,
        ),
    )(scal, x, w_lin, b_lin)

    # Drop batch and vocab padding outside the kernel.
    return out[:B, :V]


def policy_head_reference(x_nchw, params, eps=1e-5):
    conv = jnp.einsum("bchw,c->bhw", x_nchw, params["conv_w"].reshape(-1)) + params["conv_b"]
    bn = (conv - params["bn_mean"]) / jnp.sqrt(params["bn_var"] + eps)
    bn = bn * params["bn_gamma"] + params["bn_beta"]
    h = jnp.maximum(bn, 0.0).reshape(x_nchw.shape[0], -1)
    z = h @ params["lin_w"].T + params["lin_b"]
    return jax.nn.log_softmax(z, axis=1)


if __name__ == "__main__":
    # Small shapes consistent with PolicyHead(program_size=16, vocab=32, channels=4)
    B, C, H, W = 2, 4, 16, 16
    program_size = H
    vocab = 32

    key = jax.random.PRNGKey(0)
    kx, kcw, kcb, klw, klb = jax.random.split(key, 5)

    x = jax.random.normal(kx, (B, C, H, W), dtype=jnp.float32)

    params = {
        # conv1x1: Conv2d(channels -> 1, k=1)
        "conv_w": jax.random.normal(kcw, (1, C, 1, 1), dtype=jnp.float32) * 0.1,
        "conv_b": jax.random.normal(kcb, (), dtype=jnp.float32) * 0.1,
        # BatchNorm2d(1), eval mode, deterministic stats
        "bn_gamma": jnp.float32(1.1),
        "bn_beta": jnp.float32(0.05),
        "bn_mean": jnp.float32(0.02),
        "bn_var": jnp.float32(0.9),
        # Linear(program_size**2 -> vocab)
        "lin_w": jax.random.normal(klw, (vocab, program_size ** 2), dtype=jnp.float32) * 0.05,
        "lin_b": jax.random.normal(klb, (vocab,), dtype=jnp.float32) * 0.05,
    }

    out = policy_head_forward(x, params)
    out = jax.block_until_ready(out)

    ref = jax.block_until_ready(policy_head_reference(x, params))
    assert out.shape == (B, vocab)
    np.testing.assert_allclose(np.asarray(out), np.asarray(ref), atol=1e-4, rtol=1e-4)

    print("KERNEL_OK")
</pallas_src>

<mosaic_0001>
module attributes {stable_mosaic.version = 11 : i64} {
  func.func @policy_head_kernel(%arg0: i32, %arg1: memref<5xf32, #tpu.memory_space<smem>>, %arg2: memref<8x1024xf32, #tpu.memory_space<vmem>>, %arg3: memref<256x128xf32, #tpu.memory_space<vmem>>, %arg4: memref<1x128xf32, #tpu.memory_space<vmem>>, %arg5: memref<8x128xf32, #tpu.memory_space<vmem>>) attributes {dimension_semantics = [#tpu.dimension_semantics<parallel>], iteration_bounds = array<i64: 1>, scalar_prefetch = 0 : i64, scratch_operands = 0 : i64, tpu.core_type = #tpu.core_type<tc>, window_params = [{transform_indices = @transform_0, window_bounds = array<i64: 5>}, {transform_indices = @transform_1, window_bounds = array<i64: 8, 1024>}, {pipeline_mode = #tpu.pipeline_mode<synchronous>, transform_indices = @transform_2, window_bounds = array<i64: 256, 128>}, {pipeline_mode = #tpu.pipeline_mode<synchronous>, transform_indices = @transform_3, window_bounds = array<i64: 1, 128>}, {transform_indices = @transform_4, window_bounds = array<i64: 8, 128>}]} {
    %c4 = arith.constant 4 : index
    %0 = memref.load %arg1[%c4] : memref<5xf32, #tpu.memory_space<smem>>
    %c0 = arith.constant 0 : index
    %1 = memref.load %arg1[%c0] : memref<5xf32, #tpu.memory_space<smem>>
    %c0_0 = arith.constant 0 : index
    %c0_1 = arith.constant 0 : index
    %2 = vector.load %arg2[%c0_0, %c0_1] : memref<8x1024xf32, #tpu.memory_space<vmem>>, vector<8x256xf32>
    %3 = vector.broadcast %1 : f32 to vector<8x256xf32>
    %4 = arith.mulf %3, %2 : vector<8x256xf32>
    %5 = vector.broadcast %0 : f32 to vector<8x256xf32>
    %6 = arith.addf %5, %4 : vector<8x256xf32>
    %c1 = arith.constant 1 : index
    %7 = memref.load %arg1[%c1] : memref<5xf32, #tpu.memory_space<smem>>
    %c0_2 = arith.constant 0 : index
    %c256 = arith.constant 256 : index
    %8 = vector.load %arg2[%c0_2, %c256] : memref<8x1024xf32, #tpu.memory_space<vmem>>, vector<8x256xf32>
    %9 = vector.broadcast %7 : f32 to vector<8x256xf32>
    %10 = arith.mulf %9, %8 : vector<8x256xf32>
    %11 = arith.addf %6, %10 : vector<8x256xf32>
    %c2 = arith.constant 2 : index
    %12 = memref.load %arg1[%c2] : memref<5xf32, #tpu.memory_space<smem>>
    %c0_3 = arith.constant 0 : index
    %c512 = arith.constant 512 : index
    %13 = vector.load %arg2[%c0_3, %c512] : memref<8x1024xf32, #tpu.memory_space<vmem>>, vector<8x256xf32>
    %14 = vector.broadcast %12 : f32 to vector<8x256xf32>
    %15 = arith.mulf %14, %13 : vector<8x256xf32>
    %16 = arith.addf %11, %15 : vector<8x256xf32>
    %c3 = arith.constant 3 : index
    %17 = memref.load %arg1[%c3] : memref<5xf32, #tpu.memory_space<smem>>
    %c0_4 = arith.constant 0 : index
    %c768 = arith.constant 768 : index
    %18 = vector.load %arg2[%c0_4, %c768] : memref<8x1024xf32, #tpu.memory_space<vmem>>, vector<8x256xf32>
    %19 = vector.broadcast %17 : f32 to vector<8x256xf32>
    %20 = arith.mulf %19, %18 : vector<8x256xf32>
    %21 = arith.addf %16, %20 : vector<8x256xf32>
    %cst = arith.constant 0.000000e+00 : f32
    %22 = vector.broadcast %cst : f32 to vector<8x256xf32>
    %23 = arith.maximumf %21, %22 : vector<8x256xf32>
    %c0_5 = arith.constant 0 : index
    %c0_6 = arith.constant 0 : index
    %24 = vector.load %arg3[%c0_5, %c0_6] : memref<256x128xf32, #tpu.memory_space<vmem>>, vector<256x128xf32>
    %cst_7 = arith.constant dense<0.000000e+00> : vector<8x128xf32>
    %25 = tpu.matmul %23, %24, %cst_7 {dimension_numbers = #tpu.dot_dimension_numbers<[1], [0], [0], [1], [0, 0, 1, 1], [], []>} : vector<8x256xf32>, vector<256x128xf32>, vector<8x128xf32> -> vector<8x128xf32>
    %c0_8 = arith.constant 0 : index
    %c0_9 = arith.constant 0 : index
    %26 = vector.load %arg4[%c0_8, %c0_9] : memref<1x128xf32, #tpu.memory_space<vmem>>, vector<1x128xf32>
    %27 = vector.broadcast %26 : vector<1x128xf32> to vector<8x128xf32>
    %28 = arith.addf %25, %27 : vector<8x128xf32>
    %cst_10 = arith.constant dense<0xFF800000> : vector<8xf32>
    %29 = vector.multi_reduction <maximumf>, %28, %cst_10 [1] : vector<8x128xf32> to vector<8xf32>
    %30 = vector.shape_cast %29 : vector<8xf32> to vector<8x1xf32>
    %31 = vector.broadcast %30 : vector<8x1xf32> to vector<8x128xf32>
    %32 = arith.subf %28, %31 : vector<8x128xf32>
    %33 = math.exp %32 : vector<8x128xf32>
    %cst_11 = arith.constant dense<0.000000e+00> : vector<8xf32>
    %34 = vector.multi_reduction <add>, %33, %cst_11 [1] : vector<8x128xf32> to vector<8xf32>
    %35 = vector.shape_cast %34 : vector<8xf32> to vector<8x1xf32>
    %36 = math.log %35 : vector<8x1xf32>
    %37 = vector.broadcast %36 : vector<8x1xf32> to vector<8x128xf32>
    %38 = arith.subf %32, %37 : vector<8x128xf32>
    %c0_12 = arith.constant 0 : index
    %c0_13 = arith.constant 0 : index
    %39 = vector.load %arg5[%c0_12, %c0_13] : memref<8x128xf32, #tpu.memory_space<vmem>>, vector<8x128xf32>
    tpu.vector_store %arg5[%c0_12, %c0_13], %38 {strides = array<i32>} : memref<8x128xf32, #tpu.memory_space<vmem>>, vector<8x128xf32>,
    return
  }
  func.func @transform_0(%arg0: i32) -> i32 {
    %c0_i32 = arith.constant 0 : i32
    %c0_i32_0 = arith.constant 0 : i32
    return %c0_i32 : i32
  }
  func.func @transform_1(%arg0: i32) -> (i32, i32) {
    %c0_i32 = arith.constant 0 : i32
    %c0_i32_0 = arith.constant 0 : i32
    return %arg0, %c0_i32 : i32, i32
  }
  func.func @transform_2(%arg0: i32) -> (i32, i32) {
    %c0_i32 = arith.constant 0 : i32
    %c0_i32_0 = arith.constant 0 : i32
    %c0_i32_1 = arith.constant 0 : i32
    return %c0_i32, %c0_i32_0 : i32, i32
  }
  func.func @transform_3(%arg0: i32) -> (i32, i32) {
    %c0_i32 = arith.constant 0 : i32
    %c0_i32_0 = arith.constant 0 : i32
    %c0_i32_1 = arith.constant 0 : i32
    return %c0_i32, %c0_i32_0 : i32, i32
  }
  func.func @transform_4(%arg0: i32) -> (i32, i32) {
    %c0_i32 = arith.constant 0 : i32
    %c0_i32_0 = arith.constant 0 : i32
    return %arg0, %c0_i32 : i32, i32
  }
}

</mosaic_0001>

<llo_original>
// kernel: tpu_custom_call.1
$region0: #{tpu_custom_call.1}
  #allocation0 [shape = 'u32[]', space=smem, size = 0x4, offset = 0x4, fixed_abs, tag = 'smem constant byte address 0x4 - core index']
  #allocation1 [shape = 'u32[72,128]{1,0:T(1,128)}', space=vmem, size = 0x9000, scoped, tag = 'internal scratch']
  %s0 = inlined_call_operand.hbm [shape: f32[5], index: 0, kind: input, shape index: {}]
  %s1 = inlined_call_operand.hbm [shape: f32[8,1024], index: 1, kind: input, shape index: {}]
  %s2 = inlined_call_operand.hbm [shape: f32[256,128], index: 2, kind: input, shape index: {}]
  %s3 = inlined_call_operand.vmem [shape: f32[1,128], index: 3, kind: input, shape index: {}]
  %s4 = inlined_call_operand.hbm [shape: f32[8,128], index: 4, kind: output, shape index: {}]
  %s5 = sld [smem:[#allocation0]]
  $region38: #{tpu_custom_call.1} parent=0
    _
  %s7 = ssub.s32 1, %s5
  %s8 = scalar_select 0, %s7, %s5
  $region1: #{tpu_custom_call.1} parent=0
    #allocation2 [shape = 'u8[512]{0}', space=smem, size = 0x200, scoped, tag = 'input window, operand 0, single buffered']
    #allocation3 [shape = 's32[1]{0}', space=sflag, size = 0x4, scoped, tag = 'scoped memory for tpu_custom_call.1']
    #allocation4 [shape = 's32[1]{0}', space=sflag, size = 0x4, scoped, tag = 'scoped memory for tpu_custom_call.1']
    #allocation5 [shape = 's32[1]{0}', space=sflag, size = 0x4, scoped, tag = 'scoped memory for tpu_custom_call.1']
    #allocation6 [shape = 'u8[32768]{0}', space=vmem, size = 0x8000, scoped, tag = 'input window, operand 1, single buffered']
    #allocation7 [shape = 'u8[131072]{0}', space=vmem, size = 0x20000, scoped, tag = 'input window, operand 2, single buffered']
    #allocation8 [shape = 's32[1]{0}', space=sflag, size = 0x4, scoped, tag = 'scoped memory for tpu_custom_call.1']
    #allocation9 [shape = 'u8[4096]{0}', space=vmem, size = 0x1000, scoped, tag = 'output window, operand 0, single buffered']
    %9 = vsyncpa [#allocation5], 0
    %10 = vsyncpa [#allocation3], 0
    %11 = vsyncpa [#allocation8], 0
    %12 = vsyncpa [#allocation4], 0
    // Predicated region
    $region2: #{tpu_custom_call.1} parent=1 // pred_check
      _
    $region3: #{tpu_custom_call.1} parent=1 // pred_check_branch
      %14 = sbr.rel (0) target = $region5
    $region4: #{tpu_custom_call.1} parent=1 // pred_region
      %16 = vsyncadd [#allocation5], 0
      %s18 = sshll.u32 %s0, 4
      %s19 = int_to_ptr.hbm [resolvable:$true] %s18
      %21 = dma.hbm_to_smem %s19, 16, [#allocation2], [#allocation5]
    $region5: #{tpu_custom_call.1} parent=1 // pred_fallthru
      _
    // Predicated region
    $region6: #{tpu_custom_call.1} parent=1 // pred_check
      _
    $region7: #{tpu_custom_call.1} parent=1 // pred_check_branch
      %23 = sbr.rel (0) target = $region9
    $region8: #{tpu_custom_call.1} parent=1 // pred_region
      %25 = vsyncadd [#allocation3], 0
      %s27 = sshll.u32 %s1, 4
      %s28 = int_to_ptr.hbm [resolvable:$true] %s27
      %s29 = sshll.u32 [#allocation6], 4
      %s30 = int_to_ptr.vmem [resolvable:$true] %s29
      %32 = dma.hbm_to_vmem [thread:$0]  %s28, 1024, %s30, [#allocation3]
    $region9: #{tpu_custom_call.1} parent=1 // pred_fallthru
      _
    // Predicated region
    $region10: #{tpu_custom_call.1} parent=1 // pred_check
      _
    $region11: #{tpu_custom_call.1} parent=1 // pred_check_branch
      %34 = sbr.rel (0) target = $region13
    $region12: #{tpu_custom_call.1} parent=1 // pred_region
      %36 = vsyncadd [#allocation8], 0
      %s37 = sshll.u32 %s2, 4
      %s38 = int_to_ptr.hbm [resolvable:$true] %s37
      %s39 = sshll.u32 [#allocation7], 4
      %s40 = int_to_ptr.vmem [resolvable:$true] %s39
      %45 = dma.hbm_to_vmem [thread:$0]  %s38, 4096, %s40, [#allocation8], 128, 128, 8
    $region13: #{tpu_custom_call.1} parent=1 // pred_fallthru
      _
    // Predicated region
    $region14: #{tpu_custom_call.1} parent=1 // pred_check
      _
    $region15: #{tpu_custom_call.1} parent=1 // pred_check_branch
      %47 = sbr.rel (0) target = $region17
    $region16: #{tpu_custom_call.1} parent=1 // pred_region
      _
    $region17: #{tpu_custom_call.1} parent=1 // pred_fallthru
      _
    // Predicated region
    $region18: #{tpu_custom_call.1} parent=1 // pred_check
      _
    $region19: #{tpu_custom_call.1} parent=1 // pred_check_branch
      %49 = sbr.rel (0) target = $region21
    $region20: #{tpu_custom_call.1} parent=1 // pred_region
      %51 = dma.done [#allocation5], 16
    $region21: #{tpu_custom_call.1} parent=1 // pred_fallthru
      _
    // Predicated region
    $region22: #{tpu_custom_call.1} parent=1 // pred_check
      _
    $region23: #{tpu_custom_call.1} parent=1 // pred_check_branch
      %53 = sbr.rel (0) target = $region25
    $region24: #{tpu_custom_call.1} parent=1 // pred_region
      %55 = dma.done [#allocation3], 1024
    $region25: #{tpu_custom_call.1} parent=1 // pred_fallthru
      _
    // Predicated region
    $region26: #{tpu_custom_call.1} parent=1 // pred_check
      _
    $region27: #{tpu_custom_call.1} parent=1 // pred_check_branch
      %57 = sbr.rel (0) target = $region29
    $region28: #{tpu_custom_call.1} parent=1 // pred_region
      %59 = dma.done [#allocation8], 4096
    $region29: #{tpu_custom_call.1} parent=1 // pred_fallthru
      _
    %60 = sfence
    %s61 = sld [smem:[#allocation2 + $0x4]]
    %s62 = sld [smem:[#allocation2]]
    %v63 = vld [vmem:[#allocation6] sm:$0xff]
    %v64 = vld [vmem:[#allocation6 + $0x8] sm:$0xff]
    %v65 = vstv %s62
    %v66 = vmul.f32 %v65, %v63
    %v67 = vmul.f32 %v65, %v64
    %v68 = vstv %s61
    %v69 = vadd.f32 %v68, %v66
    %v70 = vadd.f32 %v68, %v67
    %s71 = sld [smem:[#allocation2 + $0x1]]
    %v72 = vld [vmem:[#allocation6 + $0x10] sm:$0xff]
    %v73 = vld [vmem:[#allocation6 + $0x18] sm:$0xff]
    %v74 = vstv %s71
    %v75 = vmul.f32 %v74, %v72
    %v76 = vmul.f32 %v74, %v73
    %v77 = vadd.f32 %v69, %v75
    %v78 = vadd.f32 %v70, %v76
    %s79 = sld [smem:[#allocation2 + $0x2]]
    %v80 = vld [vmem:[#allocation6 + $0x20] sm:$0xff]
    %v81 = vld [vmem:[#allocation6 + $0x28] sm:$0xff]
    %v82 = vstv %s79
    %v83 = vmul.f32 %v82, %v80
    %v84 = vmul.f32 %v82, %v81
    %v85 = vadd.f32 %v77, %v83
    %v86 = vadd.f32 %v78, %v84
    %s87 = sld [smem:[#allocation2 + $0x3]]
    %v88 = vld [vmem:[#allocation6 + $0x30] sm:$0xff]
    %v89 = vld [vmem:[#allocation6 + $0x38] sm:$0xff]
    %v90 = vstv %s87
    %v91 = vmul.f32 %v90, %v88
    %v92 = vmul.f32 %v90, %v89
    %v93 = vadd.f32 %v85, %v91
    %v94 = vadd.f32 %v86, %v92
    %v95 = vmax.f32 %v93, 0.0
    %v96 = vmax.f32 %v94, 0.0
    %v97 = vld [vmem:[#allocation7] sm:$0xff]
    %v98 = vld [vmem:[#allocation7 + $0x8] sm:$0xff]
    %v99 = vld [vmem:[#allocation7 + $0x10] sm:$0xff]
    %v100 = vld [vmem:[#allocation7 + $0x18] sm:$0xff]
    %v101 = vld [vmem:[#allocation7 + $0x20] sm:$0xff]
    %v102 = vld [vmem:[#allocation7 + $0x28] sm:$0xff]
    %v103 = vld [vmem:[#allocation7 + $0x30] sm:$0xff]
    %v104 = vld [vmem:[#allocation7 + $0x38] sm:$0xff]
    %v105 = vld [vmem:[#allocation7 + $0x40] sm:$0xff]
    %v106 = vld [vmem:[#allocation7 + $0x48] sm:$0xff]
    %v107 = vld [vmem:[#allocation7 + $0x50] sm:$0xff]
    %v108 = vld [vmem:[#allocation7 + $0x58] sm:$0xff]
    %v109 = vld [vmem:[#allocation7 + $0x60] sm:$0xff]
    %v110 = vld [vmem:[#allocation7 + $0x68] sm:$0xff]
    %v111 = vld [vmem:[#allocation7 + $0x70] sm:$0xff]
    %v112 = vld [vmem:[#allocation7 + $0x78] sm:$0xff]
    %v113 = vld [vmem:[#allocation7 + $0x80] sm:$0xff]
    %v114 = vld [vmem:[#allocation7 + $0x88] sm:$0xff]
    %v115 = vld [vmem:[#allocation7 + $0x90] sm:$0xff]
    %v116 = vld [vmem:[#allocation7 + $0x98] sm:$0xff]
    %v117 = vld [vmem:[#allocation7 + $0xa0] sm:$0xff]
    %v118 = vld [vmem:[#allocation7 + $0xa8] sm:$0xff]
    %v119 = vld [vmem:[#allocation7 + $0xb0] sm:$0xff]
    %v120 = vld [vmem:[#allocation7 + $0xb8] sm:$0xff]
    %v121 = vld [vmem:[#allocation7 + $0xc0] sm:$0xff]
    %v122 = vld [vmem:[#allocation7 + $0xc8] sm:$0xff]
    %v123 = vld [vmem:[#allocation7 + $0xd0] sm:$0xff]
    %v124 = vld [vmem:[#allocation7 + $0xd8] sm:$0xff]
    %v125 = vld [vmem:[#allocation7 + $0xe0] sm:$0xff]
    %v126 = vld [vmem:[#allocation7 + $0xe8] sm:$0xff]
    %v127 = vld [vmem:[#allocation7 + $0xf0] sm:$0xff]
    %v128 = vld [vmem:[#allocation7 + $0xf8] sm:$0xff]
    %v129 = vld [vmem:[%s3] sm:$0x1]
    %v131 = vperm.slane %v129, 0
    %133 = vmatpush.msra.mxu0 %v112
    %134 = vmatpush.msra.mxu0 %v111
    %135 = vmatpush.msra.mxu0 %v110
    %136 = vmatpush.msra.mxu0 %v109
    %137 = vmatpush.msra.mxu0 %v108
    %138 = vmatpush.msra.mxu0 %v107
    %139 = vmatpush.msra.mxu0 %v106
    %140 = vmatpush.msra.mxu0 %v105
    %141 = vmatpush.msra.mxu0 %v104
    %142 = vmatpush.msra.mxu0 %v103
    %143 = vmatpush.msra.mxu0 %v102
    %144 = vmatpush.msra.mxu0 %v101
    %145 = vmatpush.msra.mxu0 %v100
    %146 = vmatpush.msra.mxu0 %v99
    %147 = vmatpush.msra.mxu0 %v98
    %148 = vmatpush.msra.mxu0 %v97
    %149 = vmatmul.f32.gmra.mxu0 %v95
    %v150 = vpop.f32.mrf.mxu0
    %v151 = vadd.f32 %v131, %v150
    %152 = vdwg.mxu0
    %153 = vmatpush.msra.mxu0 %v128
    %154 = vmatpush.msra.mxu0 %v127
    %155 = vmatpush.msra.mxu0 %v126
    %156 = vmatpush.msra.mxu0 %v125
    %157 = vmatpush.msra.mxu0 %v124
    %158 = vmatpush.msra.mxu0 %v123
    %159 = vmatpush.msra.mxu0 %v122
    %160 = vmatpush.msra.mxu0 %v121
    %161 = vmatpush.msra.mxu0 %v120
    %162 = vmatpush.msra.mxu0 %v119
    %163 = vmatpush.msra.mxu0 %v118
    %164 = vmatpush.msra.mxu0 %v117
    %165 = vmatpush.msra.mxu0 %v116
    %166 = vmatpush.msra.mxu0 %v115
    %167 = vmatpush.msra.mxu0 %v114
    %168 = vmatpush.msra.mxu0 %v113
    %169 = vmatmul.f32.gmra.mxu0 %v96
    %v170 = vpop.f32.mrf.mxu0
    %v171 = vadd.f32 %v151, %v170
    %172 = vdwg.mxu0
    %173 = vmax.xlane.f32.xlu0 %v171
    %v174 = vpop.xlane.xlu0 %173
    %v175 = vsub.f32 %v171, %v174
    %v176 = vmul.f32 %v175, 1.442695
    %v177 = vpow.pop %v176
    %178 = vadd.xlane.f32.xlu0 %v177
    %v179 = vpop.xlane.xlu0 %178
    %v180 = vlog2.pop %v179
    %v181 = vmul.f32 %v180, 0.6931472
    %v182 = vsub.f32 %v175, %v181
    %183 = vst [vmem:[#allocation9] sm:$0xff] %v182
    // Predicated region
    $region30: #{tpu_custom_call.1} parent=1 // pred_check
      _
    $region31: #{tpu_custom_call.1} parent=1 // pred_check_branch
      %185 = sbr.rel (0) target = $region33
    $region32: #{tpu_custom_call.1} parent=1 // pred_region
      %187 = vsyncadd [#allocation4], 0
      %s189 = sshll.u32 [#allocation9], 4
      %s190 = int_to_ptr.vmem [resolvable:$true] %s189
      %s191 = sshll.u32 %s4, 4
      %s192 = int_to_ptr.hbm [resolvable:$true] %s191
      %194 = dma.vmem_to_hbm [thread:$0]  %s190, 128, %s192, [#allocation4]
    $region33: #{tpu_custom_call.1} parent=1 // pred_fallthru
      _
    // Predicated region
    $region34: #{tpu_custom_call.1} parent=1 // pred_check
      _
    $region35: #{tpu_custom_call.1} parent=1 // pred_check_branch
      %196 = sbr.rel (0) target = $region37
    $region36: #{tpu_custom_call.1} parent=1 // pred_region
      %198 = dma.done [#allocation4], 128
    $region37: #{tpu_custom_call.1} parent=1 // pred_fallthru
      _
    %199 = vsyncpa [#allocation3], 1
    %200 = vsyncpa [#allocation8], 1
    %201 = vsyncpa [#allocation4], 1
    %202 = vsyncpa [#allocation5], 1

</llo_original>
